<compile_context>
chip_gen: v5e
topology: v5e:2x2
jax: 0.10.0
libtpu: 0.0.40
codegen_flags: <defaults>
</compile_context>

<pallas_src>
import functools

import jax
import jax.numpy as jnp
import numpy as np
from jax.experimental import pallas as pl
from jax.experimental.pallas import tpu as pltpu


def _ceil_to(x, m):
    return (x + m - 1) // m * m


# ----------------------------------------------------------------------------
# Pallas kernel: k deep matmuls (kx folded into lanes) + fused LSTM gate math
# ----------------------------------------------------------------------------
def _convlstm_kernel(x_ref, w_ref, b_ref, c_ref, hc_ref, *,
                     hidden, k, w_cols, rb, out_lanes):
    # x_ref : (1, 1, rb + (k-1)*W, k*C)  bf16  kx-folded input band (+ky halo)
    # w_ref : (k, k*C, 4*hidden)         bf16  one (k*C, 4*hid) RHS per ky
    # b_ref : (1, 4*hidden)              f32
    # c_ref : (1, rb, hidden)            f32   previous cell state band
    # hc_ref: (1, rb, out_lanes)         f32   lane-dense [h | c | pad] slab
    #
    # Static, sublane-aligned row offsets (ky*W); k accumulated MXU matmuls
    # with contraction depth k*C.
    acc = jnp.dot(x_ref[0, 0, 0:rb, :], w_ref[0],
                  preferred_element_type=jnp.float32)
    for ky in range(1, k):
        off = ky * w_cols                      # static; multiple of W
        acc = acc + jnp.dot(x_ref[0, 0, off:off + rb, :], w_ref[ky],
                            preferred_element_type=jnp.float32)
    acc = acc + b_ref[...].astype(jnp.float32)     # (rb, 4*hid), lane-dense

    # Fused gate nonlinearities: one sigmoid over i|f|o, one tanh over g (EUP).
    sig = jax.nn.sigmoid(acc[:, :3 * hidden])
    g = jnp.tanh(acc[:, 3 * hidden:])
    i = sig[:, 0 * hidden:1 * hidden]
    f = sig[:, 1 * hidden:2 * hidden]
    o = sig[:, 2 * hidden:3 * hidden]

    c_prev = c_ref[0]
    c_next = f * c_prev + i * g
    h_next = o * jnp.tanh(c_next)

    # Single lane-dense (rb, out_lanes) store: [h | c | zero-pad to 128].
    hc = jnp.concatenate([h_next, c_next], axis=-1)
    pad = out_lanes - 2 * hidden
    if pad > 0:
        hc = jnp.concatenate(
            [hc, jnp.zeros((rb, pad), dtype=hc.dtype)], axis=-1)
    hc_ref[0] = hc.astype(hc_ref.dtype)


# ----------------------------------------------------------------------------
# Wrapper: PyTorch-compatible NCHW interface; layout glue in plain JAX
# ----------------------------------------------------------------------------
def conv_lstm_cell(x_nchw, h_prev_nchw, c_prev_nchw, weight_oihw, bias,
                   kernel_size):
    """Equivalent of ConvLSTMCell.forward(input, (h_prev, c_prev))."""
    k = int(kernel_size)
    assert k % 2 == 1, "ConvLSTMCell uses odd kernel_size (SAME padding)."
    p = k // 2
    B, Cin, H, W = x_nchw.shape
    hidden = h_prev_nchw.shape[1]
    C = Cin + hidden
    kC = k * C
    rows = H * W
    out_lanes = max(128, _ceil_to(2 * hidden, 128))

    # Spatial row-band grid axis (second "parallel" axis): >=2 bands when
    # possible so both v7x TCs stay busy regardless of batch and the per-step
    # VMEM block stays bounded at large resolutions.
    rb = rows
    for cand in (256, 128, 512, 1024, 64, 32, 16, 8):
        if rows % cand == 0 and rows // cand >= 2:
            rb = cand
            break
    nb = rows // rb
    band_rows = rb + (k - 1) * W               # band + ky halo

    # TODO(synk): for recurrent multi-step use, keep h/c in this flattened
    # channels-last (rows, lanes) slab between timesteps (input_output_aliases)
    # to delete the per-step NCHW<->NHWC transposes / pads / band restack.
    x = jnp.transpose(x_nchw, (0, 2, 3, 1))            # NCHW -> NHWC
    hpv = jnp.transpose(h_prev_nchw, (0, 2, 3, 1))
    cpv = jnp.transpose(c_prev_nchw, (0, 2, 3, 1))

    combined = jnp.concatenate([x, hpv], axis=-1).astype(jnp.bfloat16)
    xpad = jnp.pad(combined, ((0, 0), (p, p), (p, p), (0, 0)))  # (B,H+2p,W+2p,C)

    # Fold the k kx-shifts into lanes: x3[b, yp, xo, kx*C + c] = xpad[b, yp, xo+kx, c].
    # Output width is exactly W -> no garbage columns anywhere downstream.
    x3 = jnp.concatenate([xpad[:, :, kx:kx + W, :] for kx in range(k)], axis=-1)
    x3 = x3.reshape(B, (H + 2 * p) * W, kC)            # (B, (H+2p)*W, k*C) bf16

    # Row bands with a (k-1)*W halo so all in-kernel ky slices are static and
    # (for W a multiple of 16) sublane-aligned.
    x_bands = jnp.stack(
        [jax.lax.slice_in_dim(x3, j * rb, j * rb + band_rows, axis=1)
         for j in range(nb)], axis=1)                  # (B, nb, band_rows, kC)

    # PyTorch OIHW -> (ky, kx*C + c, 4*hid): one MXU RHS per ky.
    w_taps = jnp.transpose(weight_oihw, (2, 3, 1, 0)).reshape(
        k, kC, 4 * hidden).astype(jnp.bfloat16)
    b2 = bias.reshape(1, 4 * hidden).astype(jnp.float32)

    c_flat = cpv.reshape(B, rows, hidden).astype(jnp.float32)

    # Cost estimate / VMEM budget from actual padded block footprints.
    flops = 2 * B * rows * (k * k * C) * (4 * hidden)
    transcendentals = 5 * B * rows * hidden
    bytes_accessed = (x_bands.size * 2 + w_taps.size * 2 + b2.size * 4 +
                      c_flat.size * 4 + B * rows * out_lanes * 4)
    x_blk = _ceil_to(band_rows, 16) * _ceil_to(kC, 128) * 2
    c_blk = _ceil_to(rb, 8) * _ceil_to(hidden, 128) * 4
    o_blk = _ceil_to(rb, 8) * _ceil_to(out_lanes, 128) * 4
    w_blk = k * _ceil_to(kC, 16) * _ceil_to(4 * hidden, 128) * 2
    b_blk = 8 * 128 * 4
    vmem_est = 2 * (x_blk + c_blk + o_blk + w_blk + b_blk)   # double-buffered
    vmem_limit = int(min(max(4 * vmem_est, 16 * 1024 * 1024), 64 * 1024 * 1024))

    hc = pl.pallas_call(
        functools.partial(_convlstm_kernel, hidden=hidden, k=k, w_cols=W,
                          rb=rb, out_lanes=out_lanes),
        out_shape=jax.ShapeDtypeStruct((B, rows, out_lanes), jnp.float32),
        grid_spec=pltpu.PrefetchScalarGridSpec(
            num_scalar_prefetch=0,
            grid=(B, nb),
            in_specs=[
                pl.BlockSpec((1, 1, band_rows, kC), lambda b, j: (b, j, 0, 0)),
                pl.BlockSpec((k, kC, 4 * hidden), lambda b, j: (0, 0, 0)),
                pl.BlockSpec((1, 4 * hidden), lambda b, j: (0, 0)),
                pl.BlockSpec((1, rb, hidden), lambda b, j: (b, j, 0)),
            ],
            out_specs=pl.BlockSpec((1, rb, out_lanes), lambda b, j: (b, j, 0)),
        ),
        compiler_params=pltpu.CompilerParams(
            dimension_semantics=("parallel", "parallel"),
            vmem_limit_bytes=vmem_limit,
        ),
        cost_estimate=pl.CostEstimate(
            flops=flops, transcendentals=transcendentals,
            bytes_accessed=bytes_accessed),
    )(x_bands, w_taps, b2, c_flat)

    # Drop the pad lanes, split h/c, back to NCHW.
    hc = hc.reshape(B, H, W, out_lanes)
    h_next = jnp.transpose(hc[..., :hidden], (0, 3, 1, 2)).astype(x_nchw.dtype)
    c_next = jnp.transpose(hc[..., hidden:2 * hidden],
                           (0, 3, 1, 2)).astype(x_nchw.dtype)
    return h_next, c_next


# ----------------------------------------------------------------------------
# Pure-JAX reference (mirrors the PyTorch module exactly, f32)
# ----------------------------------------------------------------------------
def conv_lstm_cell_ref(x, h_prev, c_prev, weight_oihw, bias, kernel_size):
    combined = jnp.concatenate([x, h_prev], axis=1)
    conv = jax.lax.conv_general_dilated(
        combined, weight_oihw, window_strides=(1, 1), padding="SAME",
        dimension_numbers=("NCHW", "OIHW", "NCHW"))
    conv = conv + bias.reshape(1, -1, 1, 1)
    cc_i, cc_f, cc_o, cc_g = jnp.split(conv, 4, axis=1)
    i = jax.nn.sigmoid(cc_i)
    f = jax.nn.sigmoid(cc_f)
    o = jax.nn.sigmoid(cc_o)
    g = jnp.tanh(cc_g)
    c_next = f * c_prev + i * g
    h_next = o * jnp.tanh(c_next)
    return h_next, c_next


if __name__ == "__main__":
    input_size = 4
    hidden_size = 32
    kernel_size = 3
    B, H, W = 2, 16, 16

    key = jax.random.PRNGKey(0)
    kx, kh, kc, kw_, kb = jax.random.split(key, 5)

    x = jax.random.normal(kx, (B, input_size, H, W), jnp.float32)
    h_prev = jax.random.normal(kh, (B, hidden_size, H, W), jnp.float32)
    c_prev = jax.random.normal(kc, (B, hidden_size, H, W), jnp.float32)

    fan_in = (input_size + hidden_size) * kernel_size * kernel_size
    bound = 1.0 / np.sqrt(fan_in)
    weight = jax.random.uniform(
        kw_, (4 * hidden_size, input_size + hidden_size, kernel_size,
              kernel_size), jnp.float32, -bound, bound)
    bias = jax.random.uniform(kb, (4 * hidden_size,), jnp.float32, -bound,
                              bound)

    h_next, c_next = conv_lstm_cell(x, h_prev, c_prev, weight, bias,
                                    kernel_size)
    jax.block_until_ready((h_next, c_next))

    h_ref, c_ref = conv_lstm_cell_ref(x, h_prev, c_prev, weight, bias,
                                      kernel_size)
    # bf16 MXU operands -> looser tolerance than the pure-f32 reference.
    np.testing.assert_allclose(np.asarray(h_next), np.asarray(h_ref),
                               rtol=2e-2, atol=2e-2)
    np.testing.assert_allclose(np.asarray(c_next), np.asarray(c_ref),
                               rtol=2e-2, atol=2e-2)

    print("KERNEL_OK")
</pallas_src>

<mosaic_0001>
module attributes {stable_mosaic.version = 11 : i64} {
  func.func @_convlstm_kernel(%arg0: i32, %arg1: i32, %arg2: memref<1x1x160x108xbf16, #tpu.memory_space<vmem>>, %arg3: memref<3x108x128xbf16, #tpu.memory_space<vmem>>, %arg4: memref<1x128xf32, #tpu.memory_space<vmem>>, %arg5: memref<1x128x32xf32, #tpu.memory_space<vmem>>, %arg6: memref<1x128x128xf32, #tpu.memory_space<vmem>>) attributes {dimension_semantics = [#tpu.dimension_semantics<parallel>, #tpu.dimension_semantics<parallel>], iteration_bounds = array<i64: 2, 2>, scalar_prefetch = 0 : i64, scratch_operands = 0 : i64, tpu.core_type = #tpu.core_type<tc>, window_params = [{transform_indices = @transform_0, window_bounds = array<i64: 1, 1, 160, 108>}, {pipeline_mode = #tpu.pipeline_mode<synchronous>, transform_indices = @transform_1, window_bounds = array<i64: 3, 108, 128>}, {pipeline_mode = #tpu.pipeline_mode<synchronous>, transform_indices = @transform_2, window_bounds = array<i64: 1, 128>}, {transform_indices = @transform_3, window_bounds = array<i64: 1, 128, 32>}, {transform_indices = @transform_4, window_bounds = array<i64: 1, 128, 128>}]} {
    %c0 = arith.constant 0 : index
    %c0_0 = arith.constant 0 : index
    %c0_1 = arith.constant 0 : index
    %c0_2 = arith.constant 0 : index
    %0 = vector.load %arg2[%c0, %c0_0, %c0_1, %c0_2] : memref<1x1x160x108xbf16, #tpu.memory_space<vmem>>, vector<1x1x128x108xbf16>
    %1 = vector.shape_cast %0 : vector<1x1x128x108xbf16> to vector<128x108xbf16>
    %c0_3 = arith.constant 0 : index
    %c0_4 = arith.constant 0 : index
    %c0_5 = arith.constant 0 : index
    %2 = vector.load %arg3[%c0_3, %c0_4, %c0_5] : memref<3x108x128xbf16, #tpu.memory_space<vmem>>, vector<1x108x128xbf16>
    %3 = vector.shape_cast %2 : vector<1x108x128xbf16> to vector<108x128xbf16>
    %cst = arith.constant dense<0.000000e+00> : vector<128x128xf32>
    %4 = tpu.matmul %1, %3, %cst {dimension_numbers = #tpu.dot_dimension_numbers<[1], [0], [0], [1], [0, 0, 1, 1], [], []>} : vector<128x108xbf16>, vector<108x128xbf16>, vector<128x128xf32> -> vector<128x128xf32>
    %c0_6 = arith.constant 0 : index
    %c0_7 = arith.constant 0 : index
    %c16 = arith.constant 16 : index
    %c0_8 = arith.constant 0 : index
    %5 = vector.load %arg2[%c0_6, %c0_7, %c16, %c0_8] : memref<1x1x160x108xbf16, #tpu.memory_space<vmem>>, vector<1x1x128x108xbf16>
    %6 = vector.shape_cast %5 : vector<1x1x128x108xbf16> to vector<128x108xbf16>
    %c1 = arith.constant 1 : index
    %c0_9 = arith.constant 0 : index
    %c0_10 = arith.constant 0 : index
    %7 = vector.load %arg3[%c1, %c0_9, %c0_10] : memref<3x108x128xbf16, #tpu.memory_space<vmem>>, vector<1x108x128xbf16>
    %8 = vector.shape_cast %7 : vector<1x108x128xbf16> to vector<108x128xbf16>
    %cst_11 = arith.constant dense<0.000000e+00> : vector<128x128xf32>
    %9 = tpu.matmul %6, %8, %cst_11 {dimension_numbers = #tpu.dot_dimension_numbers<[1], [0], [0], [1], [0, 0, 1, 1], [], []>} : vector<128x108xbf16>, vector<108x128xbf16>, vector<128x128xf32> -> vector<128x128xf32>
    %10 = arith.addf %4, %9 : vector<128x128xf32>
    %c0_12 = arith.constant 0 : index
    %c0_13 = arith.constant 0 : index
    %c32 = arith.constant 32 : index
    %c0_14 = arith.constant 0 : index
    %11 = vector.load %arg2[%c0_12, %c0_13, %c32, %c0_14] : memref<1x1x160x108xbf16, #tpu.memory_space<vmem>>, vector<1x1x128x108xbf16>
    %12 = vector.shape_cast %11 : vector<1x1x128x108xbf16> to vector<128x108xbf16>
    %c2 = arith.constant 2 : index
    %c0_15 = arith.constant 0 : index
    %c0_16 = arith.constant 0 : index
    %13 = vector.load %arg3[%c2, %c0_15, %c0_16] : memref<3x108x128xbf16, #tpu.memory_space<vmem>>, vector<1x108x128xbf16>
    %14 = vector.shape_cast %13 : vector<1x108x128xbf16> to vector<108x128xbf16>
    %cst_17 = arith.constant dense<0.000000e+00> : vector<128x128xf32>
    %15 = tpu.matmul %12, %14, %cst_17 {dimension_numbers = #tpu.dot_dimension_numbers<[1], [0], [0], [1], [0, 0, 1, 1], [], []>} : vector<128x108xbf16>, vector<108x128xbf16>, vector<128x128xf32> -> vector<128x128xf32>
    %16 = arith.addf %10, %15 : vector<128x128xf32>
    %c0_18 = arith.constant 0 : index
    %c0_19 = arith.constant 0 : index
    %17 = vector.load %arg4[%c0_18, %c0_19] : memref<1x128xf32, #tpu.memory_space<vmem>>, vector<1x128xf32>
    %18 = vector.broadcast %17 : vector<1x128xf32> to vector<128x128xf32>
    %19 = arith.addf %16, %18 : vector<128x128xf32>
    %20 = vector.extract_strided_slice %19 {offsets = [0, 0], sizes = [128, 96], strides = [1, 1]} : vector<128x128xf32> to vector<128x96xf32>
    %21 = arith.negf %20 : vector<128x96xf32>
    %22 = math.exp %21 : vector<128x96xf32>
    %cst_20 = arith.constant 1.000000e+00 : f32
    %23 = vector.broadcast %cst_20 : f32 to vector<128x96xf32>
    %24 = arith.addf %23, %22 : vector<128x96xf32>
    %25 = arith.divf %23, %24 : vector<128x96xf32>
    %26 = vector.extract_strided_slice %19 {offsets = [0, 96], sizes = [128, 32], strides = [1, 1]} : vector<128x128xf32> to vector<128x32xf32>
    %27 = math.tanh %26 : vector<128x32xf32>
    %28 = vector.extract_strided_slice %25 {offsets = [0, 0], sizes = [128, 32], strides = [1, 1]} : vector<128x96xf32> to vector<128x32xf32>
    %29 = vector.extract_strided_slice %25 {offsets = [0, 32], sizes = [128, 32], strides = [1, 1]} : vector<128x96xf32> to vector<128x32xf32>
    %30 = vector.extract_strided_slice %25 {offsets = [0, 64], sizes = [128, 32], strides = [1, 1]} : vector<128x96xf32> to vector<128x32xf32>
    %c0_21 = arith.constant 0 : index
    %c0_22 = arith.constant 0 : index
    %c0_23 = arith.constant 0 : index
    %31 = vector.load %arg5[%c0_21, %c0_22, %c0_23] : memref<1x128x32xf32, #tpu.memory_space<vmem>>, vector<1x128x32xf32>
    %32 = vector.shape_cast %31 : vector<1x128x32xf32> to vector<128x32xf32>
    %33 = arith.mulf %29, %32 : vector<128x32xf32>
    %34 = arith.mulf %28, %27 : vector<128x32xf32>
    %35 = arith.addf %33, %34 : vector<128x32xf32>
    %36 = math.tanh %35 : vector<128x32xf32>
    %37 = arith.mulf %30, %36 : vector<128x32xf32>
    %38 = tpu.concatenate %37, %35 in 1 : vector<128x32xf32>, vector<128x32xf32> -> vector<128x64xf32>
    %cst_24 = arith.constant 0.000000e+00 : f32
    %39 = vector.broadcast %cst_24 : f32 to vector<128x64xf32>
    %40 = tpu.concatenate %38, %39 in 1 : vector<128x64xf32>, vector<128x64xf32> -> vector<128x128xf32>
    %c0_25 = arith.constant 0 : index
    %c0_26 = arith.constant 0 : index
    %c0_27 = arith.constant 0 : index
    %41 = vector.load %arg6[%c0_25, %c0_26, %c0_27] : memref<1x128x128xf32, #tpu.memory_space<vmem>>, vector<1x128x128xf32>
    %42 = vector.shape_cast %41 : vector<1x128x128xf32> to vector<128x128xf32>
    %43 = vector.shape_cast %40 : vector<128x128xf32> to vector<1x128x128xf32>
    tpu.vector_store %arg6[%c0_25, %c0_26, %c0_27], %43 {strides = array<i32>} : memref<1x128x128xf32, #tpu.memory_space<vmem>>, vector<1x128x128xf32>,
    return
  }
  func.func @transform_0(%arg0: i32, %arg1: i32) -> (i32, i32, i32, i32) {
    %c0_i32 = arith.constant 0 : i32
    %c0_i32_0 = arith.constant 0 : i32
    %c0_i32_1 = arith.constant 0 : i32
    return %arg0, %arg1, %c0_i32, %c0_i32_0 : i32, i32, i32, i32
  }
  func.func @transform_1(%arg0: i32, %arg1: i32) -> (i32, i32, i32) {
    %c0_i32 = arith.constant 0 : i32
    %c0_i32_0 = arith.constant 0 : i32
    %c0_i32_1 = arith.constant 0 : i32
    %c0_i32_2 = arith.constant 0 : i32
    return %c0_i32, %c0_i32_0, %c0_i32_1 : i32, i32, i32
  }
  func.func @transform_2(%arg0: i32, %arg1: i32) -> (i32, i32) {
    %c0_i32 = arith.constant 0 : i32
    %c0_i32_0 = arith.constant 0 : i32
    %c0_i32_1 = arith.constant 0 : i32
    return %c0_i32, %c0_i32_0 : i32, i32
  }
  func.func @transform_3(%arg0: i32, %arg1: i32) -> (i32, i32, i32) {
    %c0_i32 = arith.constant 0 : i32
    %c0_i32_0 = arith.constant 0 : i32
    return %arg0, %arg1, %c0_i32 : i32, i32, i32
  }
  func.func @transform_4(%arg0: i32, %arg1: i32) -> (i32, i32, i32) {
    %c0_i32 = arith.constant 0 : i32
    %c0_i32_0 = arith.constant 0 : i32
    return %arg0, %arg1, %c0_i32 : i32, i32, i32
  }
}

</mosaic_0001>

<llo_original>
// kernel: tpu_custom_call.1
$region0: #{tpu_custom_call.1}
  #allocation0 [shape = 'u32[]', space=smem, size = 0x4, offset = 0x4, fixed_abs, tag = 'smem constant byte address 0x4 - core index']
  #allocation1 [shape = 'u32[72,128]{1,0:T(1,128)}', space=vmem, size = 0x9000, scoped, tag = 'internal scratch']
  %s0 = inlined_call_operand.vmem [shape: bf16[2,2,160,108], index: 0, kind: input, shape index: {}]
  %s1 = inlined_call_operand.vmem [shape: bf16[3,108,128], index: 1, kind: input, shape index: {}]
  %s2 = inlined_call_operand.vmem [shape: f32[1,128], index: 2, kind: input, shape index: {}]
  %s3 = inlined_call_operand.vmem [shape: f32[2,256,32], index: 3, kind: input, shape index: {}]
  %s4 = inlined_call_operand.hbm [shape: f32[2,256,128], index: 4, kind: output, shape index: {}]
  %s5 = sld [smem:[#allocation0]]
  $region49: #{tpu_custom_call.1} parent=0
    _
  %s7 = ssub.s32 1, %s5
  %s8 = scalar_select 0, %s7, %s5
  $region1: #{tpu_custom_call.1} parent=0
    #allocation2 [shape = 'u8[131072]{0}', space=vmem, size = 0x20000, scoped, tag = 'output window, operand 0']
    #allocation3 [shape = 's32[2]{0}', space=sflag, size = 0x8, scoped, tag = 'scoped memory for tpu_custom_call.1']
    %9 = vsyncpa [#allocation3], 0
    %s10 = scalar_lea.sflag [#allocation3], 1
    %11 = vsyncpa %s10, 0
    loop: start=0, step=1, limit=6
    $region2: #{tpu_custom_call.1} parent=1 // loop_pre_header
      _
    $region3: #{tpu_custom_call.1} parent=1 // loop_header
      %s13 = sphi 0, %s17
      %p14 = scmp.ge.s32.totalorder %s13, 6
      %s20 = sphi 0, %s32
      %s21 = sphi 0, %s28
      %s22 = sphi 0, %s20
      %s23 = sphi 0, %s21
      %s24 = sphi 0, %s22
      %s25 = sphi 0, %s23
      %s37 = sphi 0, %s39
      %s40 = sphi 0, %s37
      %s41 = sphi 0, %s40
      %s57 = sphi 0, %s41
      %s61 = sphi 0, %s61
      %s63 = sphi 0, %s61
      %s64 = sphi 0, %s63
      %s78 = sphi 0, %s64
      %s82 = sphi 0, %s82
      %s84 = sphi 0, %s82
      %s85 = sphi 0, %s84
      %s99 = sphi 0, %s85
      %s107 = sphi 0, %s109
      %s110 = sphi 0, %s107
      %s111 = sphi 0, %s110
      %s127 = sphi 0, %s111
      %s135 = sphi 0, %s137
      %s138 = sphi 0, %s135
      %s139 = sphi 0, %s138
      %s155 = sphi 0, %s139
    $region4: #{tpu_custom_call.1} parent=1 // loop_header_branch
      %16 = sbr.rel (%p14) target = $region8
    $region5: #{tpu_custom_call.1} parent=1 // loop_body
      %s18 = ssub.s32 %s13, 1
      %s19 = ssub.s32 %s13, 2
      %s26 = sadd.s32 1, %s21
      %p27 = scmp.ge.s32.totalorder %s26, 2
      %s28 = scalar_select %p27, 0, %s26
      %s29 = sadd.s32 1, %s20
      %s30 = scalar_select %p27, %s29, %s20
      %p31 = scmp.ge.s32.totalorder %s30, 2
      %s32 = scalar_select %p31, 0, %s30
      %s33 = ssub.s32 %s20, %s32
      %s34 = ssub.s32 %s21, %s28
      %s35 = sor.u32 %s33, %s34
      %p36 = scmp.eq.s32.totalorder %s35, 0
      %s38 = sadd.s32 %s37, 1
      %s39 = scalar_select %p36, %s37, %s38
      %p42 = pneg %p36
      %p43 = scmp.eq.s32.totalorder %s13, 3
      %p44 = por %p42, %p43
      %p45 = scmp.ne.s32.totalorder %s37, %s40
      %p46 = scmp.eq.s32.totalorder %s13, 0
      %p47 = por %p45, %p46
      %p48 = scmp.ne.s32.totalorder %s37, %s40
      %p49 = scmp.eq.s32.totalorder %s18, 3
      %p50 = por %p48, %p49
      %p51 = scmp.ne.s32.totalorder %s40, %s41
      %p52 = scmp.eq.s32.totalorder %s18, 0
      %p53 = por %p51, %p52
      %p54 = scmp.ne.s32.totalorder %s40, %s41
      %p55 = scmp.eq.s32.totalorder %s19, 3
      %p56 = por %p54, %p55
      %p58 = scmp.ne.s32.totalorder %s41, %s57
      %p59 = scmp.eq.s32.totalorder %s19, 0
      %p60 = por %p58, %p59
      %s62 = sadd.s32 %s61, 1
      %p65 = scmp.eq.s32.totalorder %s13, 3
      %p66 = scmp.ne.s32.totalorder %s61, %s63
      %p67 = scmp.eq.s32.totalorder %s13, 0
      %p68 = por %p66, %p67
      %p69 = scmp.ne.s32.totalorder %s61, %s63
      %p70 = scmp.eq.s32.totalorder %s18, 3
      %p71 = por %p69, %p70
      %p72 = scmp.ne.s32.totalorder %s63, %s64
      %p73 = scmp.eq.s32.totalorder %s18, 0
      %p74 = por %p72, %p73
      %p75 = scmp.ne.s32.totalorder %s63, %s64
      %p76 = scmp.eq.s32.totalorder %s19, 3
      %p77 = por %p75, %p76
      %p79 = scmp.ne.s32.totalorder %s64, %s78
      %p80 = scmp.eq.s32.totalorder %s19, 0
      %p81 = por %p79, %p80
      %s83 = sadd.s32 %s82, 1
      %p86 = scmp.eq.s32.totalorder %s13, 3
      %p87 = scmp.ne.s32.totalorder %s82, %s84
      %p88 = scmp.eq.s32.totalorder %s13, 0
      %p89 = por %p87, %p88
      %p90 = scmp.ne.s32.totalorder %s82, %s84
      %p91 = scmp.eq.s32.totalorder %s18, 3
      %p92 = por %p90, %p91
      %p93 = scmp.ne.s32.totalorder %s84, %s85
      %p94 = scmp.eq.s32.totalorder %s18, 0
      %p95 = por %p93, %p94
      %p96 = scmp.ne.s32.totalorder %s84, %s85
      %p97 = scmp.eq.s32.totalorder %s19, 3
      %p98 = por %p96, %p97
      %p100 = scmp.ne.s32.totalorder %s85, %s99
      %p101 = scmp.eq.s32.totalorder %s19, 0
      %p102 = por %p100, %p101
      %s103 = ssub.s32 %s20, %s32
      %s104 = ssub.s32 %s21, %s28
      %s105 = sor.u32 %s103, %s104
      %p106 = scmp.eq.s32.totalorder %s105, 0
      %s108 = sadd.s32 %s107, 1
      %s109 = scalar_select %p106, %s107, %s108
      %p112 = pneg %p106
      %p113 = scmp.eq.s32.totalorder %s13, 3
      %p114 = por %p112, %p113
      %p115 = scmp.ne.s32.totalorder %s107, %s110
      %p116 = scmp.eq.s32.totalorder %s13, 0
      %p117 = por %p115, %p116
      %p118 = scmp.ne.s32.totalorder %s107, %s110
      %p119 = scmp.eq.s32.totalorder %s18, 3
      %p120 = por %p118, %p119
      %p121 = scmp.ne.s32.totalorder %s110, %s111
      %p122 = scmp.eq.s32.totalorder %s18, 0
      %p123 = por %p121, %p122
      %p124 = scmp.ne.s32.totalorder %s110, %s111
      %p125 = scmp.eq.s32.totalorder %s19, 3
      %p126 = por %p124, %p125
      %p128 = scmp.ne.s32.totalorder %s111, %s127
      %p129 = scmp.eq.s32.totalorder %s19, 0
      %p130 = por %p128, %p129
      %s131 = ssub.s32 %s20, %s32
      %s132 = ssub.s32 %s21, %s28
      %s133 = sor.u32 %s131, %s132
      %p134 = scmp.eq.s32.totalorder %s133, 0
      %s136 = sadd.s32 %s135, 1
      %s137 = scalar_select %p134, %s135, %s136
      %p140 = pneg %p134
      %p141 = scmp.eq.s32.totalorder %s13, 3
      %p142 = por %p140, %p141
      %p143 = scmp.ne.s32.totalorder %s135, %s138
      %p144 = scmp.eq.s32.totalorder %s13, 0
      %p145 = por %p143, %p144
      %p146 = scmp.ne.s32.totalorder %s135, %s138
      %p147 = scmp.eq.s32.totalorder %s18, 3
      %p148 = por %p146, %p147
      %p149 = scmp.ne.s32.totalorder %s138, %s139
      %p150 = scmp.eq.s32.totalorder %s18, 0
      %p151 = por %p149, %p150
      %p152 = scmp.ne.s32.totalorder %s138, %s139
      %p153 = scmp.eq.s32.totalorder %s19, 3
      %p154 = por %p152, %p153
      %p156 = scmp.ne.s32.totalorder %s139, %s155
      %p157 = scmp.eq.s32.totalorder %s19, 0
      %p158 = por %p156, %p157
      %p159 = scmp.le.s32.totalorder 1, %s13
      %p160 = scmp.lt.s32.totalorder %s13, 5
      %p161 = pnand %p159, %p160
      %p162 = pneg %p161
      // Predicated region
      $region9: #{tpu_custom_call.1} parent=5 // pred_check
        _
      $region10: #{tpu_custom_call.1} parent=5 // pred_check_branch
        %164 = sbr.rel (%p161) target = $region12
      $region11: #{tpu_custom_call.1} parent=5 // pred_region
        %s165 = ssub.s32 %s13, 1
        // Predicated region
        $region13: #{tpu_custom_call.1} parent=11 // pred_check
          %p166 = pneg %p74
        $region14: #{tpu_custom_call.1} parent=11 // pred_check_branch
          %168 = sbr.rel (%p166) target = $region16
        $region15: #{tpu_custom_call.1} parent=11 // pred_region
          _
        $region16: #{tpu_custom_call.1} parent=11 // pred_fallthru
          _
        // Predicated region
        $region17: #{tpu_custom_call.1} parent=11 // pred_check
          %p169 = pneg %p95
        $region18: #{tpu_custom_call.1} parent=11 // pred_check_branch
          %171 = sbr.rel (%p169) target = $region20
        $region19: #{tpu_custom_call.1} parent=11 // pred_region
          _
        $region20: #{tpu_custom_call.1} parent=11 // pred_fallthru
          _
      $region12: #{tpu_custom_call.1} parent=5 // pred_fallthru
        _
      %p172 = scmp.lt.s32.totalorder %s13, 4
      // Predicated region
      $region21: #{tpu_custom_call.1} parent=5 // pred_check
        %p173 = pneg %p172
      $region22: #{tpu_custom_call.1} parent=5 // pred_check_branch
        %175 = sbr.rel (%p173) target = $region24
      $region23: #{tpu_custom_call.1} parent=5 // pred_region
        // Predicated region
        $region25: #{tpu_custom_call.1} parent=23 // pred_check
          %p176 = pneg %p47
        $region26: #{tpu_custom_call.1} parent=23 // pred_check_branch
          %178 = sbr.rel (%p176) target = $region28
        $region27: #{tpu_custom_call.1} parent=23 // pred_region
          %p179 = scmp.lt.s32.totalorder %s20, 1
          %s180 = scalar_select %p179, %s20, 1
          %p181 = scmp.lt.s32.totalorder %s21, 1
          %s182 = scalar_select %p181, %s21, 1
          %s183 = smul.addr %s182, 20
          %s184 = smul.addr %s180, 40
          %s185 = sadd.s32 %s183, %s184
          %s186 = smul.addr %s185, 4
          %s187 = scalar_lea.vmem %s0, %s186
        $region28: #{tpu_custom_call.1} parent=23 // pred_fallthru
          _
        // Predicated region
        $region29: #{tpu_custom_call.1} parent=23 // pred_check
          %p188 = pneg %p117
        $region30: #{tpu_custom_call.1} parent=23 // pred_check_branch
          %190 = sbr.rel (%p188) target = $region32
        $region31: #{tpu_custom_call.1} parent=23 // pred_region
          %s191 = smul.u32 16, %s21
          %p192 = scmp.lt.s32.totalorder %s20, 1
          %s193 = scalar_select %p192, %s20, 1
          %p194 = scmp.lt.s32.totalorder %s191, 31
          %s195 = scalar_select %p194, %s191, 31
          %s196 = smul.addr %s193, 32
          %s197 = sadd.s32 %s195, %s196
          %s198 = smul.addr %s197, 8
          %s199 = scalar_lea.vmem %s3, %s198
          %s200 = smul.u32 16, %s21
        $region32: #{tpu_custom_call.1} parent=23 // pred_fallthru
          _
      $region24: #{tpu_custom_call.1} parent=5 // pred_fallthru
        _
      %p201 = scmp.le.s32.totalorder 1, %s13
      %p202 = scmp.lt.s32.totalorder %s13, 5
      %p203 = pnand %p201, %p202
      %p204 = pneg %p203
      // Predicated region
      $region33: #{tpu_custom_call.1} parent=5 // pred_check
        _
      $region34: #{tpu_custom_call.1} parent=5 // pred_check_branch
        %206 = sbr.rel (%p203) target = $region36
      $region35: #{tpu_custom_call.1} parent=5 // pred_region
        %s207 = ssub.s32 %s13, 1
        %p208 = scmp.lt.s32.totalorder %s22, 1
        %s209 = scalar_select %p208, %s22, 1
        %p210 = scmp.lt.s32.totalorder %s23, 1
        %s211 = scalar_select %p210, %s23, 1
        %s212 = smul.addr %s211, 20
        %s213 = smul.addr %s209, 40
        %s214 = sadd.s32 %s212, %s213
        %s215 = smul.addr %s214, 4
        %s216 = scalar_lea.vmem %s0, %s215
        %p217 = pneg %p53
        %p218 = pneg %p50
        %p219 = pneg %p74
        %p220 = pneg %p71
        %p221 = pneg %p95
        %p222 = pneg %p92
        %s223 = smul.u32 16, %s23
        %p224 = scmp.lt.s32.totalorder %s22, 1
        %s225 = scalar_select %p224, %s22, 1
        %p226 = scmp.lt.s32.totalorder %s223, 31
        %s227 = scalar_select %p226, %s223, 31
        %s228 = smul.addr %s225, 32
        %s229 = sadd.s32 %s227, %s228
        %s230 = smul.addr %s229, 8
        %s231 = scalar_lea.vmem %s3, %s230
        %p232 = pneg %p123
        %p233 = pneg %p120
        %p234 = pneg %p151
        %p235 = pneg %p148
        %s236 = sand.u32 %s138, 1
        %s237 = scalar_lea.sflag [#allocation3], %s236
        %s238 = sand.u32 %s138, 1
        %s239 = smul.addr %s238, 128
        %s240 = scalar_lea.vmem [#allocation2], %s239
        %p241 = scmp.lt.s32.totalorder %s22, 1
        %s242 = scalar_select %p241, %s22, 1
        %p243 = scmp.lt.s32.totalorder %s23, 1
        %s244 = scalar_select %p243, %s23, 1
        %s245 = smul.addr %s244, 20
        %s246 = smul.addr %s242, 40
        %s247 = sadd.s32 %s245, %s246
        %s248 = smul.addr %s247, 4
        %s249 = scalar_lea.vmem %s0, %s248
        %s250 = smul.u32 16, %s23
        %p251 = scmp.lt.s32.totalorder %s22, 1
        %s252 = scalar_select %p251, %s22, 1
        %p253 = scmp.lt.s32.totalorder %s250, 31
        %s254 = scalar_select %p253, %s250, 31
        %s255 = smul.addr %s252, 32
        %s256 = sadd.s32 %s254, %s255
        %s257 = smul.addr %s256, 8
        %s258 = scalar_lea.vmem %s3, %s257
        %s259 = smul.u32 16, %s23
        %s260 = smul.u32 16, %s23
        %v262 = vld [vmem:[%s249] sm:$0xf]
        %v263 = vld [vmem:[%s249 + $0x4] sm:$0xf]
        %v264 = vld [vmem:[%s249 + $0x8] sm:$0xf]
        %v265 = vld [vmem:[%s249 + $0xc] sm:$0xf]
        %v266 = vld [vmem:[%s249 + $0x10] sm:$0xf]
        %v267 = vld [vmem:[%s249 + $0x14] sm:$0xf]
        %v268 = vld [vmem:[%s249 + $0x18] sm:$0xf]
        %v269 = vld [vmem:[%s249 + $0x1c] sm:$0xf]
        %v270 = vld [vmem:[%s249 + $0x20] sm:$0xf]
        %v271 = vld [vmem:[%s249 + $0x24] sm:$0xf]
        %v272 = vld [vmem:[%s249 + $0x28] sm:$0xf]
        %v273 = vld [vmem:[%s249 + $0x2c] sm:$0xf]
        %v274 = vld [vmem:[%s249 + $0x30] sm:$0xf]
        %v275 = vld [vmem:[%s249 + $0x34] sm:$0xf]
        %v276 = vld [vmem:[%s249 + $0x38] sm:$0xf]
        %v277 = vld [vmem:[%s249 + $0x3c] sm:$0xf]
        %v278 = vld [vmem:[%s1] sm:$0xf]
        %v279 = vld [vmem:[%s1 + $0x4] sm:$0xf]
        %v280 = vld [vmem:[%s1 + $0x8] sm:$0xf]
        %v281 = vld [vmem:[%s1 + $0xc] sm:$0xf]
        %v282 = vld [vmem:[%s1 + $0x10] sm:$0xf]
        %v283 = vld [vmem:[%s1 + $0x14] sm:$0xf]
        %v284 = vld [vmem:[%s1 + $0x18] sm:$0xf]
        %v285 = vld [vmem:[%s1 + $0x1c] sm:$0xf]
        %v286 = vld [vmem:[%s1 + $0x20] sm:$0xf]
        %v287 = vld [vmem:[%s1 + $0x24] sm:$0xf]
        %v288 = vld [vmem:[%s1 + $0x28] sm:$0xf]
        %v289 = vld [vmem:[%s1 + $0x2c] sm:$0xf]
        %v290 = vld [vmem:[%s1 + $0x30] sm:$0xf]
        %v291 = vld [vmem:[%s1 + $0x34] sm:$0x3]
        %v292 = vld [vmem:[%s249 + $0x40] sm:$0xf]
        %v293 = vld [vmem:[%s249 + $0x44] sm:$0xf]
        %s294 = scalar_lea.vmem %s1, 56
        %v295 = vld [vmem:[%s294] sm:$0xf]
        %v296 = vld [vmem:[%s294 + $0x4] sm:$0xf]
        %v297 = vld [vmem:[%s294 + $0x8] sm:$0xf]
        %v298 = vld [vmem:[%s294 + $0xc] sm:$0xf]
        %v299 = vld [vmem:[%s294 + $0x10] sm:$0xf]
        %v300 = vld [vmem:[%s294 + $0x14] sm:$0xf]
        %v301 = vld [vmem:[%s294 + $0x18] sm:$0xf]
        %v302 = vld [vmem:[%s294 + $0x1c] sm:$0xf]
        %v303 = vld [vmem:[%s294 + $0x20] sm:$0xf]
        %v304 = vld [vmem:[%s294 + $0x24] sm:$0xf]
        %v305 = vld [vmem:[%s294 + $0x28] sm:$0xf]
        %v306 = vld [vmem:[%s294 + $0x2c] sm:$0xf]
        %v307 = vld [vmem:[%s294 + $0x30] sm:$0xf]
        %v308 = vld [vmem:[%s294 + $0x34] sm:$0x3]
        %v325 = vunpack.c.l.b16 %v264
        %v326 = vunpack.c.l.b16 %v265
        %v327 = vunpack.c.l.b16 %v266
        %v328 = vunpack.c.l.b16 %v267
        %v329 = vunpack.c.l.b16 %v268
        %v330 = vunpack.c.l.b16 %v269
        %v331 = vunpack.c.l.b16 %v270
        %v332 = vunpack.c.l.b16 %v271
        %v333 = vunpack.c.l.b16 %v272
        %v334 = vunpack.c.l.b16 %v273
        %v335 = vunpack.c.l.b16 %v274
        %v336 = vunpack.c.l.b16 %v275
        %v337 = vunpack.c.l.b16 %v276
        %v338 = vunpack.c.l.b16 %v277
        %v339 = vunpack.c.l.b16 %v292
        %v340 = vunpack.c.l.b16 %v293
        %v341 = vpack.c.b16 %v326, %v325
        %v342 = vpack.c.b16 %v328, %v327
        %v343 = vpack.c.b16 %v330, %v329
        %v344 = vpack.c.b16 %v332, %v331
        %v345 = vpack.c.b16 %v334, %v333
        %v346 = vpack.c.b16 %v336, %v335
        %v347 = vpack.c.b16 %v338, %v337
        %v348 = vpack.c.b16 %v340, %v339
        %v363 = vunpack.c.l.b16 %v295
        %v364 = vunpack.c.l.b16 %v296
        %v365 = vunpack.c.l.b16 %v297
        %v366 = vunpack.c.l.b16 %v298
        %v367 = vunpack.c.l.b16 %v299
        %v368 = vunpack.c.l.b16 %v300
        %v369 = vunpack.c.l.b16 %v301
        %v370 = vunpack.c.l.b16 %v302
        %v371 = vunpack.c.l.b16 %v303
        %v372 = vunpack.c.l.b16 %v304
        %v373 = vunpack.c.l.b16 %v305
        %v374 = vunpack.c.l.b16 %v306
        %v375 = vunpack.c.l.b16 %v307
        %v376 = vunpack.c.l.b16 %v308
        %v377 = vpack.c.b16 %v364, %v363
        %v378 = vpack.c.b16 %v366, %v365
        %v379 = vpack.c.b16 %v368, %v367
        %v380 = vpack.c.b16 %v370, %v369
        %v381 = vpack.c.b16 %v372, %v371
        %v382 = vpack.c.b16 %v374, %v373
        %v383 = vpack.c.b16 %v376, %v375
        %vm390 = vcmask 883712
        %v392 = vsel %vm390, %v341, 0
        %v395 = vsel %vm390, %v342, 0
        %v398 = vsel %vm390, %v343, 0
        %v401 = vsel %vm390, %v344, 0
        %v404 = vsel %vm390, %v345, 0
        %v407 = vsel %vm390, %v346, 0
        %v410 = vsel %vm390, %v347, 0
        %v413 = vsel %vm390, %v348, 0
        %vm415 = vcmask 1045504
        %v417 = vsel %vm415, %v383, 0
        %419 = vmatpush.bf16.msra.mxu0 0
        %420 = vmatpush.bf16.msra.mxu0 %v417
        %421 = vmatpush.bf16.msra.mxu0 %v382
        %422 = vmatpush.bf16.msra.mxu0 %v381
        %423 = vmatpush.bf16.msra.mxu0 %v380
        %424 = vmatpush.bf16.msra.mxu0 %v379
        %425 = vmatpush.bf16.msra.mxu0 %v378
        %426 = vmatpush.bf16.msra.mxu0 %v377
        %427 = vmatmul.bf16.gmra.mxu0 %v392
        %v428 = vpop.f32.mrf.mxu0
        %v429 = vadd.f32 0.0, %v428
        %v430 = vpop.f32.mrf.mxu0
        %v431 = vadd.f32 0.0, %v430
        %432 = vmatmul.bf16.gmra.mxu0 %v395
        %v433 = vpop.f32.mrf.mxu0
        %v434 = vadd.f32 0.0, %v433
        %v435 = vpop.f32.mrf.mxu0
        %v436 = vadd.f32 0.0, %v435
        %437 = vmatmul.bf16.gmra.mxu0 %v398
        %v438 = vpop.f32.mrf.mxu0
        %v439 = vadd.f32 0.0, %v438
        %v440 = vpop.f32.mrf.mxu0
        %v441 = vadd.f32 0.0, %v440
        %442 = vmatmul.bf16.gmra.mxu0 %v401
        %v443 = vpop.f32.mrf.mxu0
        %v444 = vadd.f32 0.0, %v443
        %v445 = vpop.f32.mrf.mxu0
        %v446 = vadd.f32 0.0, %v445
        %447 = vmatmul.bf16.gmra.mxu0 %v404
        %v448 = vpop.f32.mrf.mxu0
        %v449 = vadd.f32 0.0, %v448
        %v450 = vpop.f32.mrf.mxu0
        %v451 = vadd.f32 0.0, %v450
        %452 = vmatmul.bf16.gmra.mxu0 %v407
        %v453 = vpop.f32.mrf.mxu0
        %v454 = vadd.f32 0.0, %v453
        %v455 = vpop.f32.mrf.mxu0
        %v456 = vadd.f32 0.0, %v455
        %457 = vmatmul.bf16.gmra.mxu0 %v410
        %v458 = vpop.f32.mrf.mxu0
        %v459 = vadd.f32 0.0, %v458
        %v460 = vpop.f32.mrf.mxu0
        %v461 = vadd.f32 0.0, %v460
        %462 = vmatmul.bf16.gmra.mxu0 %v413
        %v463 = vpop.f32.mrf.mxu0
        %v464 = vadd.f32 0.0, %v463
        %v465 = vpop.f32.mrf.mxu0
        %v466 = vadd.f32 0.0, %v465
        %467 = vdwg.mxu0
        %v470 = vunpack.c.l.b16 %v262
        %v471 = vunpack.c.l.b16 %v263
        %v472 = vpack.c.b16 %v471, %v470
        %v487 = vunpack.c.l.b16 %v278
        %v488 = vunpack.c.l.b16 %v279
        %v489 = vunpack.c.l.b16 %v280
        %v490 = vunpack.c.l.b16 %v281
        %v491 = vunpack.c.l.b16 %v282
        %v492 = vunpack.c.l.b16 %v283
        %v493 = vunpack.c.l.b16 %v284
        %v494 = vunpack.c.l.b16 %v285
        %v495 = vunpack.c.l.b16 %v286
        %v496 = vunpack.c.l.b16 %v287
        %v497 = vunpack.c.l.b16 %v288
        %v498 = vunpack.c.l.b16 %v289
        %v499 = vunpack.c.l.b16 %v290
        %v500 = vunpack.c.l.b16 %v291
        %v501 = vpack.c.b16 %v488, %v487
        %v502 = vpack.c.b16 %v490, %v489
        %v503 = vpack.c.b16 %v492, %v491
        %v504 = vpack.c.b16 %v494, %v493
        %v505 = vpack.c.b16 %v496, %v495
        %v506 = vpack.c.b16 %v498, %v497
        %v507 = vpack.c.b16 %v500, %v499
        %v515 = vsel %vm390, %v472, 0
        %v518 = vsel %vm415, %v507, 0
        %520 = vmatpush.bf16.msra.mxu0 0
        %521 = vmatpush.bf16.msra.mxu0 %v518
        %522 = vmatpush.bf16.msra.mxu0 %v506
        %523 = vmatpush.bf16.msra.mxu0 %v505
        %524 = vmatpush.bf16.msra.mxu0 %v504
        %525 = vmatpush.bf16.msra.mxu0 %v503
        %526 = vmatpush.bf16.msra.mxu0 %v502
        %527 = vmatpush.bf16.msra.mxu0 %v501
        %528 = vmatmul.bf16.gmra.mxu0 %v515
        %v529 = vpop.f32.mrf.mxu0
        %v530 = vadd.f32 %v429, %v529
        %v531 = vpop.f32.mrf.mxu0
        %v532 = vadd.f32 %v431, %v531
        %533 = vmatmul.bf16.gmra.mxu0 %v392
        %v534 = vpop.f32.mrf.mxu0
        %v535 = vadd.f32 %v434, %v534
        %v536 = vpop.f32.mrf.mxu0
        %v537 = vadd.f32 %v436, %v536
        %538 = vmatmul.bf16.gmra.mxu0 %v395
        %v539 = vpop.f32.mrf.mxu0
        %v540 = vadd.f32 %v439, %v539
        %v541 = vpop.f32.mrf.mxu0
        %v542 = vadd.f32 %v441, %v541
        %543 = vmatmul.bf16.gmra.mxu0 %v398
        %v544 = vpop.f32.mrf.mxu0
        %v545 = vadd.f32 %v444, %v544
        %v546 = vpop.f32.mrf.mxu0
        %v547 = vadd.f32 %v446, %v546
        %548 = vmatmul.bf16.gmra.mxu0 %v401
        %v549 = vpop.f32.mrf.mxu0
        %v550 = vadd.f32 %v449, %v549
        %v551 = vpop.f32.mrf.mxu0
        %v552 = vadd.f32 %v451, %v551
        %553 = vmatmul.bf16.gmra.mxu0 %v404
        %v554 = vpop.f32.mrf.mxu0
        %v555 = vadd.f32 %v454, %v554
        %v556 = vpop.f32.mrf.mxu0
        %v557 = vadd.f32 %v456, %v556
        %558 = vmatmul.bf16.gmra.mxu0 %v407
        %v559 = vpop.f32.mrf.mxu0
        %v560 = vadd.f32 %v459, %v559
        %v561 = vpop.f32.mrf.mxu0
        %v562 = vadd.f32 %v461, %v561
        %563 = vmatmul.bf16.gmra.mxu0 %v410
        %v564 = vpop.f32.mrf.mxu0
        %v565 = vadd.f32 %v464, %v564
        %v566 = vpop.f32.mrf.mxu0
        %v567 = vadd.f32 %v466, %v566
        %568 = vdwg.mxu0
        %v569 = vld [vmem:[%s249 + $0x10] sm:$0xf]
        %v570 = vld [vmem:[%s249 + $0x14] sm:$0xf]
        %v571 = vld [vmem:[%s249 + $0x18] sm:$0xf]
        %v572 = vld [vmem:[%s249 + $0x1c] sm:$0xf]
        %v573 = vld [vmem:[%s249 + $0x20] sm:$0xf]
        %v574 = vld [vmem:[%s249 + $0x24] sm:$0xf]
        %v575 = vld [vmem:[%s249 + $0x28] sm:$0xf]
        %v576 = vld [vmem:[%s249 + $0x2c] sm:$0xf]
        %v577 = vld [vmem:[%s249 + $0x30] sm:$0xf]
        %v578 = vld [vmem:[%s249 + $0x34] sm:$0xf]
        %v579 = vld [vmem:[%s249 + $0x38] sm:$0xf]
        %v580 = vld [vmem:[%s249 + $0x3c] sm:$0xf]
        %v581 = vld [vmem:[%s249 + $0x40] sm:$0xf]
        %v582 = vld [vmem:[%s249 + $0x44] sm:$0xf]
        %v583 = vld [vmem:[%s249 + $0x48] sm:$0xf]
        %v584 = vld [vmem:[%s249 + $0x4c] sm:$0xf]
        %s585 = scalar_lea.vmem %s1, 112
        %v586 = vld [vmem:[%s585] sm:$0xf]
        %v587 = vld [vmem:[%s585 + $0x4] sm:$0xf]
        %v588 = vld [vmem:[%s585 + $0x8] sm:$0xf]
        %v589 = vld [vmem:[%s585 + $0xc] sm:$0xf]
        %v590 = vld [vmem:[%s585 + $0x10] sm:$0xf]
        %v591 = vld [vmem:[%s585 + $0x14] sm:$0xf]
        %v592 = vld [vmem:[%s585 + $0x18] sm:$0xf]
        %v593 = vld [vmem:[%s585 + $0x1c] sm:$0xf]
        %v594 = vld [vmem:[%s585 + $0x20] sm:$0xf]
        %v595 = vld [vmem:[%s585 + $0x24] sm:$0xf]
        %v596 = vld [vmem:[%s585 + $0x28] sm:$0xf]
        %v597 = vld [vmem:[%s585 + $0x2c] sm:$0xf]
        %v598 = vld [vmem:[%s585 + $0x30] sm:$0xf]
        %v599 = vld [vmem:[%s585 + $0x34] sm:$0x3]
        %v616 = vunpack.c.l.b16 %v569
        %v617 = vunpack.c.l.b16 %v570
        %v618 = vunpack.c.l.b16 %v571
        %v619 = vunpack.c.l.b16 %v572
        %v620 = vunpack.c.l.b16 %v573
        %v621 = vunpack.c.l.b16 %v574
        %v622 = vunpack.c.l.b16 %v575
        %v623 = vunpack.c.l.b16 %v576
        %v624 = vunpack.c.l.b16 %v577
        %v625 = vunpack.c.l.b16 %v578
        %v626 = vunpack.c.l.b16 %v579
        %v627 = vunpack.c.l.b16 %v580
        %v628 = vunpack.c.l.b16 %v581
        %v629 = vunpack.c.l.b16 %v582
        %v630 = vunpack.c.l.b16 %v583
        %v631 = vunpack.c.l.b16 %v584
        %v632 = vpack.c.b16 %v617, %v616
        %v633 = vpack.c.b16 %v619, %v618
        %v634 = vpack.c.b16 %v621, %v620
        %v635 = vpack.c.b16 %v623, %v622
        %v636 = vpack.c.b16 %v625, %v624
        %v637 = vpack.c.b16 %v627, %v626
        %v638 = vpack.c.b16 %v629, %v628
        %v639 = vpack.c.b16 %v631, %v630
        %v654 = vunpack.c.l.b16 %v586
        %v655 = vunpack.c.l.b16 %v587
        %v656 = vunpack.c.l.b16 %v588
        %v657 = vunpack.c.l.b16 %v589
        %v658 = vunpack.c.l.b16 %v590
        %v659 = vunpack.c.l.b16 %v591
        %v660 = vunpack.c.l.b16 %v592
        %v661 = vunpack.c.l.b16 %v593
        %v662 = vunpack.c.l.b16 %v594
        %v663 = vunpack.c.l.b16 %v595
        %v664 = vunpack.c.l.b16 %v596
        %v665 = vunpack.c.l.b16 %v597
        %v666 = vunpack.c.l.b16 %v598
        %v667 = vunpack.c.l.b16 %v599
        %v668 = vpack.c.b16 %v655, %v654
        %v669 = vpack.c.b16 %v657, %v656
        %v670 = vpack.c.b16 %v659, %v658
        %v671 = vpack.c.b16 %v661, %v660
        %v672 = vpack.c.b16 %v663, %v662
        %v673 = vpack.c.b16 %v665, %v664
        %v674 = vpack.c.b16 %v667, %v666
        %v682 = vsel %vm390, %v632, 0
        %v685 = vsel %vm390, %v633, 0
        %v688 = vsel %vm390, %v634, 0
        %v691 = vsel %vm390, %v635, 0
        %v694 = vsel %vm390, %v636, 0
        %v697 = vsel %vm390, %v637, 0
        %v700 = vsel %vm390, %v638, 0
        %v703 = vsel %vm390, %v639, 0
        %v706 = vsel %vm415, %v674, 0
        %708 = vmatpush.bf16.msra.mxu0 0
        %709 = vmatpush.bf16.msra.mxu0 %v706
        %710 = vmatpush.bf16.msra.mxu0 %v673
        %711 = vmatpush.bf16.msra.mxu0 %v672
        %712 = vmatpush.bf16.msra.mxu0 %v671
        %713 = vmatpush.bf16.msra.mxu0 %v670
        %714 = vmatpush.bf16.msra.mxu0 %v669
        %715 = vmatpush.bf16.msra.mxu0 %v668
        %716 = vmatmul.bf16.gmra.mxu0 %v682
        %v717 = vpop.f32.mrf.mxu0
        %v718 = vadd.f32 0.0, %v717
        %v719 = vpop.f32.mrf.mxu0
        %v720 = vadd.f32 0.0, %v719
        %721 = vmatmul.bf16.gmra.mxu0 %v685
        %v722 = vpop.f32.mrf.mxu0
        %v723 = vadd.f32 0.0, %v722
        %v724 = vpop.f32.mrf.mxu0
        %v725 = vadd.f32 0.0, %v724
        %726 = vmatmul.bf16.gmra.mxu0 %v688
        %v727 = vpop.f32.mrf.mxu0
        %v728 = vadd.f32 0.0, %v727
        %v729 = vpop.f32.mrf.mxu0
        %v730 = vadd.f32 0.0, %v729
        %731 = vmatmul.bf16.gmra.mxu0 %v691
        %v732 = vpop.f32.mrf.mxu0
        %v733 = vadd.f32 0.0, %v732
        %v734 = vpop.f32.mrf.mxu0
        %v735 = vadd.f32 0.0, %v734
        %736 = vmatmul.bf16.gmra.mxu0 %v694
        %v737 = vpop.f32.mrf.mxu0
        %v738 = vadd.f32 0.0, %v737
        %v739 = vpop.f32.mrf.mxu0
        %v740 = vadd.f32 0.0, %v739
        %741 = vmatmul.bf16.gmra.mxu0 %v697
        %v742 = vpop.f32.mrf.mxu0
        %v743 = vadd.f32 0.0, %v742
        %v744 = vpop.f32.mrf.mxu0
        %v745 = vadd.f32 0.0, %v744
        %746 = vmatmul.bf16.gmra.mxu0 %v700
        %v747 = vpop.f32.mrf.mxu0
        %v748 = vadd.f32 0.0, %v747
        %v749 = vpop.f32.mrf.mxu0
        %v750 = vadd.f32 0.0, %v749
        %751 = vmatmul.bf16.gmra.mxu0 %v703
        %v752 = vpop.f32.mrf.mxu0
        %v753 = vadd.f32 0.0, %v752
        %v754 = vpop.f32.mrf.mxu0
        %v755 = vadd.f32 0.0, %v754
        %756 = vdwg.mxu0
        %v757 = vadd.f32 %v530, %v718
        %v758 = vadd.f32 %v532, %v720
        %v759 = vadd.f32 %v535, %v723
        %v760 = vadd.f32 %v537, %v725
        %v761 = vadd.f32 %v540, %v728
        %v762 = vadd.f32 %v542, %v730
        %v763 = vadd.f32 %v545, %v733
        %v764 = vadd.f32 %v547, %v735
        %v765 = vadd.f32 %v550, %v738
        %v766 = vadd.f32 %v552, %v740
        %v767 = vadd.f32 %v555, %v743
        %v768 = vadd.f32 %v557, %v745
        %v769 = vadd.f32 %v560, %v748
        %v770 = vadd.f32 %v562, %v750
        %v771 = vadd.f32 %v565, %v753
        %v772 = vadd.f32 %v567, %v755
        %v773 = vld [vmem:[%s2] sm:$0x1]
        %v775 = vperm.slane %v773, 0
        %v777 = vadd.f32 %v757, %v775
        %v778 = vadd.f32 %v758, %v775
        %v779 = vadd.f32 %v759, %v775
        %v780 = vadd.f32 %v760, %v775
        %v781 = vadd.f32 %v761, %v775
        %v782 = vadd.f32 %v762, %v775
        %v783 = vadd.f32 %v763, %v775
        %v784 = vadd.f32 %v764, %v775
        %v785 = vadd.f32 %v765, %v775
        %v786 = vadd.f32 %v766, %v775
        %v787 = vadd.f32 %v767, %v775
        %v788 = vadd.f32 %v768, %v775
        %v789 = vadd.f32 %v769, %v775
        %v790 = vadd.f32 %v770, %v775
        %v791 = vadd.f32 %v771, %v775
        %v792 = vadd.f32 %v772, %v775
        %v793 = vxor.u32 %v777, 2147483648
        %v794 = vxor.u32 %v778, 2147483648
        %v795 = vxor.u32 %v779, 2147483648
        %v796 = vxor.u32 %v780, 2147483648
        %v797 = vxor.u32 %v781, 2147483648
        %v798 = vxor.u32 %v782, 2147483648
        %v799 = vxor.u32 %v783, 2147483648
        %v800 = vxor.u32 %v784, 2147483648
        %v801 = vxor.u32 %v785, 2147483648
        %v802 = vxor.u32 %v786, 2147483648
        %v803 = vxor.u32 %v787, 2147483648
        %v804 = vxor.u32 %v788, 2147483648
        %v805 = vxor.u32 %v789, 2147483648
        %v806 = vxor.u32 %v790, 2147483648
        %v807 = vxor.u32 %v791, 2147483648
        %v808 = vxor.u32 %v792, 2147483648
        %v809 = vmul.f32 %v793, 1.442695
        %v810 = vpow.pop %v809
        %v811 = vmul.f32 %v794, 1.442695
        %v812 = vpow.pop %v811
        %v813 = vmul.f32 %v795, 1.442695
        %v814 = vpow.pop %v813
        %v815 = vmul.f32 %v796, 1.442695
        %v816 = vpow.pop %v815
        %v817 = vmul.f32 %v797, 1.442695
        %v818 = vpow.pop %v817
        %v819 = vmul.f32 %v798, 1.442695
        %v820 = vpow.pop %v819
        %v821 = vmul.f32 %v799, 1.442695
        %v822 = vpow.pop %v821
        %v823 = vmul.f32 %v800, 1.442695
        %v824 = vpow.pop %v823
        %v825 = vmul.f32 %v801, 1.442695
        %v826 = vpow.pop %v825
        %v827 = vmul.f32 %v802, 1.442695
        %v828 = vpow.pop %v827
        %v829 = vmul.f32 %v803, 1.442695
        %v830 = vpow.pop %v829
        %v831 = vmul.f32 %v804, 1.442695
        %v832 = vpow.pop %v831
        %v833 = vmul.f32 %v805, 1.442695
        %v834 = vpow.pop %v833
        %v835 = vmul.f32 %v806, 1.442695
        %v836 = vpow.pop %v835
        %v837 = vmul.f32 %v807, 1.442695
        %v838 = vpow.pop %v837
        %v839 = vmul.f32 %v808, 1.442695
        %v840 = vpow.pop %v839
        %v841 = vadd.f32 %v810, 1.0
        %v842 = vadd.f32 %v812, 1.0
        %v843 = vadd.f32 %v814, 1.0
        %v844 = vadd.f32 %v816, 1.0
        %v845 = vadd.f32 %v818, 1.0
        %v846 = vadd.f32 %v820, 1.0
        %v847 = vadd.f32 %v822, 1.0
        %v848 = vadd.f32 %v824, 1.0
        %v849 = vadd.f32 %v826, 1.0
        %v850 = vadd.f32 %v828, 1.0
        %v851 = vadd.f32 %v830, 1.0
        %v852 = vadd.f32 %v832, 1.0
        %v853 = vadd.f32 %v834, 1.0
        %v854 = vadd.f32 %v836, 1.0
        %v855 = vadd.f32 %v838, 1.0
        %v856 = vadd.f32 %v840, 1.0
        %v857 = vrcp.pop %v841
        %v858 = vmul.f32 %v841, %v857
        %v859 = vsub.f32 1.0, %v858
        %v860 = vmul.f32 %v857, %v859
        %v861 = vadd.f32 %v857, %v860
        %vm862 = vweird.f32 %v841
        %vm863 = vweird.f32 %v857
        %vm864 = vmor %vm862, %vm863
        %v865 = vsel %vm864, %v857, %v861
        %v866 = vand.u32 2147483647, %v841
        %vm867 = vcmp.eq.f32.partialorder %v866, 8.507059e+37
        %v868 = vand.u32 %v841, 2147483648
        %v869 = vor.u32 1.1754944e-38, %v868
        %v870 = vsel %vm867, %v869, %v865
        %v871 = vmul.f32 1.0, %v870
        %v872 = vrcp.pop %v842
        %v873 = vmul.f32 %v842, %v872
        %v874 = vsub.f32 1.0, %v873
        %v875 = vmul.f32 %v872, %v874
        %v876 = vadd.f32 %v872, %v875
        %vm877 = vweird.f32 %v842
        %vm878 = vweird.f32 %v872
        %vm879 = vmor %vm877, %vm878
        %v880 = vsel %vm879, %v872, %v876
        %v881 = vand.u32 2147483647, %v842
        %vm882 = vcmp.eq.f32.partialorder %v881, 8.507059e+37
        %v883 = vand.u32 %v842, 2147483648
        %v884 = vor.u32 1.1754944e-38, %v883
        %v885 = vsel %vm882, %v884, %v880
        %v886 = vmul.f32 1.0, %v885
        %v887 = vrcp.pop %v843
        %v888 = vmul.f32 %v843, %v887
        %v889 = vsub.f32 1.0, %v888
        %v890 = vmul.f32 %v887, %v889
        %v891 = vadd.f32 %v887, %v890
        %vm892 = vweird.f32 %v843
        %vm893 = vweird.f32 %v887
        %vm894 = vmor %vm892, %vm893
        %v895 = vsel %vm894, %v887, %v891
        %v896 = vand.u32 2147483647, %v843
        %vm897 = vcmp.eq.f32.partialorder %v896, 8.507059e+37
        %v898 = vand.u32 %v843, 2147483648
        %v899 = vor.u32 1.1754944e-38, %v898
        %v900 = vsel %vm897, %v899, %v895
        %v901 = vmul.f32 1.0, %v900
        %v902 = vrcp.pop %v844
        %v903 = vmul.f32 %v844, %v902
        %v904 = vsub.f32 1.0, %v903
        %v905 = vmul.f32 %v902, %v904
        %v906 = vadd.f32 %v902, %v905
        %vm907 = vweird.f32 %v844
        %vm908 = vweird.f32 %v902
        %vm909 = vmor %vm907, %vm908
        %v910 = vsel %vm909, %v902, %v906
        %v911 = vand.u32 2147483647, %v844
        %vm912 = vcmp.eq.f32.partialorder %v911, 8.507059e+37
        %v913 = vand.u32 %v844, 2147483648
        %v914 = vor.u32 1.1754944e-38, %v913
        %v915 = vsel %vm912, %v914, %v910
        %v916 = vmul.f32 1.0, %v915
        %v917 = vrcp.pop %v845
        %v918 = vmul.f32 %v845, %v917
        %v919 = vsub.f32 1.0, %v918
        %v920 = vmul.f32 %v917, %v919
        %v921 = vadd.f32 %v917, %v920
        %vm922 = vweird.f32 %v845
        %vm923 = vweird.f32 %v917
        %vm924 = vmor %vm922, %vm923
        %v925 = vsel %vm924, %v917, %v921
        %v926 = vand.u32 2147483647, %v845
        %vm927 = vcmp.eq.f32.partialorder %v926, 8.507059e+37
        %v928 = vand.u32 %v845, 2147483648
        %v929 = vor.u32 1.1754944e-38, %v928
        %v930 = vsel %vm927, %v929, %v925
        %v931 = vmul.f32 1.0, %v930
        %v932 = vrcp.pop %v846
        %v933 = vmul.f32 %v846, %v932
        %v934 = vsub.f32 1.0, %v933
        %v935 = vmul.f32 %v932, %v934
        %v936 = vadd.f32 %v932, %v935
        %vm937 = vweird.f32 %v846
        %vm938 = vweird.f32 %v932
        %vm939 = vmor %vm937, %vm938
        %v940 = vsel %vm939, %v932, %v936
        %v941 = vand.u32 2147483647, %v846
        %vm942 = vcmp.eq.f32.partialorder %v941, 8.507059e+37
        %v943 = vand.u32 %v846, 2147483648
        %v944 = vor.u32 1.1754944e-38, %v943
        %v945 = vsel %vm942, %v944, %v940
        %v946 = vmul.f32 1.0, %v945
        %v947 = vrcp.pop %v847
        %v948 = vmul.f32 %v847, %v947
        %v949 = vsub.f32 1.0, %v948
        %v950 = vmul.f32 %v947, %v949
        %v951 = vadd.f32 %v947, %v950
        %vm952 = vweird.f32 %v847
        %vm953 = vweird.f32 %v947
        %vm954 = vmor %vm952, %vm953
        %v955 = vsel %vm954, %v947, %v951
        %v956 = vand.u32 2147483647, %v847
        %vm957 = vcmp.eq.f32.partialorder %v956, 8.507059e+37
        %v958 = vand.u32 %v847, 2147483648
        %v959 = vor.u32 1.1754944e-38, %v958
        %v960 = vsel %vm957, %v959, %v955
        %v961 = vmul.f32 1.0, %v960
        %v962 = vrcp.pop %v848
        %v963 = vmul.f32 %v848, %v962
        %v964 = vsub.f32 1.0, %v963
        %v965 = vmul.f32 %v962, %v964
        %v966 = vadd.f32 %v962, %v965
        %vm967 = vweird.f32 %v848
        %vm968 = vweird.f32 %v962
        %vm969 = vmor %vm967, %vm968
        %v970 = vsel %vm969, %v962, %v966
        %v971 = vand.u32 2147483647, %v848
        %vm972 = vcmp.eq.f32.partialorder %v971, 8.507059e+37
        %v973 = vand.u32 %v848, 2147483648
        %v974 = vor.u32 1.1754944e-38, %v973
        %v975 = vsel %vm972, %v974, %v970
        %v976 = vmul.f32 1.0, %v975
        %v977 = vrcp.pop %v849
        %v978 = vmul.f32 %v849, %v977
        %v979 = vsub.f32 1.0, %v978
        %v980 = vmul.f32 %v977, %v979
        %v981 = vadd.f32 %v977, %v980
        %vm982 = vweird.f32 %v849
        %vm983 = vweird.f32 %v977
        %vm984 = vmor %vm982, %vm983
        %v985 = vsel %vm984, %v977, %v981
        %v986 = vand.u32 2147483647, %v849
        %vm987 = vcmp.eq.f32.partialorder %v986, 8.507059e+37
        %v988 = vand.u32 %v849, 2147483648
        %v989 = vor.u32 1.1754944e-38, %v988
        %v990 = vsel %vm987, %v989, %v985
        %v991 = vmul.f32 1.0, %v990
        %v992 = vrcp.pop %v850
        %v993 = vmul.f32 %v850, %v992
        %v994 = vsub.f32 1.0, %v993
        %v995 = vmul.f32 %v992, %v994
        %v996 = vadd.f32 %v992, %v995
        %vm997 = vweird.f32 %v850
        %vm998 = vweird.f32 %v992
        %vm999 = vmor %vm997, %vm998
        %v1000 = vsel %vm999, %v992, %v996
        %v1001 = vand.u32 2147483647, %v850
        %vm1002 = vcmp.eq.f32.partialorder %v1001, 8.507059e+37
        %v1003 = vand.u32 %v850, 2147483648
        %v1004 = vor.u32 1.1754944e-38, %v1003
        %v1005 = vsel %vm1002, %v1004, %v1000
        %v1006 = vmul.f32 1.0, %v1005
        %v1007 = vrcp.pop %v851
        %v1008 = vmul.f32 %v851, %v1007
        %v1009 = vsub.f32 1.0, %v1008
        %v1010 = vmul.f32 %v1007, %v1009
        %v1011 = vadd.f32 %v1007, %v1010
        %vm1012 = vweird.f32 %v851
        %vm1013 = vweird.f32 %v1007
        %vm1014 = vmor %vm1012, %vm1013
        %v1015 = vsel %vm1014, %v1007, %v1011
        %v1016 = vand.u32 2147483647, %v851
        %vm1017 = vcmp.eq.f32.partialorder %v1016, 8.507059e+37
        %v1018 = vand.u32 %v851, 2147483648
        %v1019 = vor.u32 1.1754944e-38, %v1018
        %v1020 = vsel %vm1017, %v1019, %v1015
        %v1021 = vmul.f32 1.0, %v1020
        %v1022 = vrcp.pop %v852
        %v1023 = vmul.f32 %v852, %v1022
        %v1024 = vsub.f32 1.0, %v1023
        %v1025 = vmul.f32 %v1022, %v1024
        %v1026 = vadd.f32 %v1022, %v1025
        %vm1027 = vweird.f32 %v852
        %vm1028 = vweird.f32 %v1022
        %vm1029 = vmor %vm1027, %vm1028
        %v1030 = vsel %vm1029, %v1022, %v1026
        %v1031 = vand.u32 2147483647, %v852
        %vm1032 = vcmp.eq.f32.partialorder %v1031, 8.507059e+37
        %v1033 = vand.u32 %v852, 2147483648
        %v1034 = vor.u32 1.1754944e-38, %v1033
        %v1035 = vsel %vm1032, %v1034, %v1030
        %v1036 = vmul.f32 1.0, %v1035
        %v1037 = vrcp.pop %v853
        %v1038 = vmul.f32 %v853, %v1037
        %v1039 = vsub.f32 1.0, %v1038
        %v1040 = vmul.f32 %v1037, %v1039
        %v1041 = vadd.f32 %v1037, %v1040
        %vm1042 = vweird.f32 %v853
        %vm1043 = vweird.f32 %v1037
        %vm1044 = vmor %vm1042, %vm1043
        %v1045 = vsel %vm1044, %v1037, %v1041
        %v1046 = vand.u32 2147483647, %v853
        %vm1047 = vcmp.eq.f32.partialorder %v1046, 8.507059e+37
        %v1048 = vand.u32 %v853, 2147483648
        %v1049 = vor.u32 1.1754944e-38, %v1048
        %v1050 = vsel %vm1047, %v1049, %v1045
        %v1051 = vmul.f32 1.0, %v1050
        %v1052 = vrcp.pop %v854
        %v1053 = vmul.f32 %v854, %v1052
        %v1054 = vsub.f32 1.0, %v1053
        %v1055 = vmul.f32 %v1052, %v1054
        %v1056 = vadd.f32 %v1052, %v1055
        %vm1057 = vweird.f32 %v854
        %vm1058 = vweird.f32 %v1052
        %vm1059 = vmor %vm1057, %vm1058
        %v1060 = vsel %vm1059, %v1052, %v1056
        %v1061 = vand.u32 2147483647, %v854
        %vm1062 = vcmp.eq.f32.partialorder %v1061, 8.507059e+37
        %v1063 = vand.u32 %v854, 2147483648
        %v1064 = vor.u32 1.1754944e-38, %v1063
        %v1065 = vsel %vm1062, %v1064, %v1060
        %v1066 = vmul.f32 1.0, %v1065
        %v1067 = vrcp.pop %v855
        %v1068 = vmul.f32 %v855, %v1067
        %v1069 = vsub.f32 1.0, %v1068
        %v1070 = vmul.f32 %v1067, %v1069
        %v1071 = vadd.f32 %v1067, %v1070
        %vm1072 = vweird.f32 %v855
        %vm1073 = vweird.f32 %v1067
        %vm1074 = vmor %vm1072, %vm1073
        %v1075 = vsel %vm1074, %v1067, %v1071
        %v1076 = vand.u32 2147483647, %v855
        %vm1077 = vcmp.eq.f32.partialorder %v1076, 8.507059e+37
        %v1078 = vand.u32 %v855, 2147483648
        %v1079 = vor.u32 1.1754944e-38, %v1078
        %v1080 = vsel %vm1077, %v1079, %v1075
        %v1081 = vmul.f32 1.0, %v1080
        %v1082 = vrcp.pop %v856
        %v1083 = vmul.f32 %v856, %v1082
        %v1084 = vsub.f32 1.0, %v1083
        %v1085 = vmul.f32 %v1082, %v1084
        %v1086 = vadd.f32 %v1082, %v1085
        %vm1087 = vweird.f32 %v856
        %vm1088 = vweird.f32 %v1082
        %vm1089 = vmor %vm1087, %vm1088
        %v1090 = vsel %vm1089, %v1082, %v1086
        %v1091 = vand.u32 2147483647, %v856
        %vm1092 = vcmp.eq.f32.partialorder %v1091, 8.507059e+37
        %v1093 = vand.u32 %v856, 2147483648
        %v1094 = vor.u32 1.1754944e-38, %v1093
        %v1095 = vsel %vm1092, %v1094, %v1090
        %v1096 = vmul.f32 1.0, %v1095
        %v1097 = vtanh.pop %v777
        %v1098 = vtanh.pop %v778
        %v1099 = vtanh.pop %v779
        %v1100 = vtanh.pop %v780
        %v1101 = vtanh.pop %v781
        %v1102 = vtanh.pop %v782
        %v1103 = vtanh.pop %v783
        %v1104 = vtanh.pop %v784
        %v1105 = vtanh.pop %v785
        %v1106 = vtanh.pop %v786
        %v1107 = vtanh.pop %v787
        %v1108 = vtanh.pop %v788
        %v1109 = vtanh.pop %v789
        %v1110 = vtanh.pop %v790
        %v1111 = vtanh.pop %v791
        %v1112 = vtanh.pop %v792
        %v1113 = vld [vmem:[%s258] sm:$0xff]
        %v1114 = vld [vmem:[%s258 + $0x8] sm:$0xff]
        %v1115 = vld [vmem:[%s258 + $0x10] sm:$0xff]
        %v1116 = vld [vmem:[%s258 + $0x18] sm:$0xff]
        %v1117 = vld [vmem:[%s258 + $0x20] sm:$0xff]
        %v1118 = vld [vmem:[%s258 + $0x28] sm:$0xff]
        %v1119 = vld [vmem:[%s258 + $0x30] sm:$0xff]
        %v1120 = vld [vmem:[%s258 + $0x38] sm:$0xff]
        %v1121 = vld [vmem:[%s258 + $0x40] sm:$0xff]
        %v1122 = vld [vmem:[%s258 + $0x48] sm:$0xff]
        %v1123 = vld [vmem:[%s258 + $0x50] sm:$0xff]
        %v1124 = vld [vmem:[%s258 + $0x58] sm:$0xff]
        %v1125 = vld [vmem:[%s258 + $0x60] sm:$0xff]
        %v1126 = vld [vmem:[%s258 + $0x68] sm:$0xff]
        %v1127 = vld [vmem:[%s258 + $0x70] sm:$0xff]
        %v1128 = vld [vmem:[%s258 + $0x78] sm:$0xff]
        %1145 = vrot.lane.b32.xlu0 %v1113, 32
        %v1146 = vpop.permute.xlu0 %1145
        %1147 = vrot.lane.b32.xlu0 %v1114, 32
        %v1148 = vpop.permute.xlu0 %1147
        %1149 = vrot.lane.b32.xlu0 %v1115, 32
        %v1150 = vpop.permute.xlu0 %1149
        %1151 = vrot.lane.b32.xlu0 %v1116, 32
        %v1152 = vpop.permute.xlu0 %1151
        %1153 = vrot.lane.b32.xlu0 %v1117, 32
        %v1154 = vpop.permute.xlu0 %1153
        %1155 = vrot.lane.b32.xlu0 %v1118, 32
        %v1156 = vpop.permute.xlu0 %1155
        %1157 = vrot.lane.b32.xlu0 %v1119, 32
        %v1158 = vpop.permute.xlu0 %1157
        %1159 = vrot.lane.b32.xlu0 %v1120, 32
        %v1160 = vpop.permute.xlu0 %1159
        %1161 = vrot.lane.b32.xlu0 %v1121, 32
        %v1162 = vpop.permute.xlu0 %1161
        %1163 = vrot.lane.b32.xlu0 %v1122, 32
        %v1164 = vpop.permute.xlu0 %1163
        %1165 = vrot.lane.b32.xlu0 %v1123, 32
        %v1166 = vpop.permute.xlu0 %1165
        %1167 = vrot.lane.b32.xlu0 %v1124, 32
        %v1168 = vpop.permute.xlu0 %1167
        %1169 = vrot.lane.b32.xlu0 %v1125, 32
        %v1170 = vpop.permute.xlu0 %1169
        %1171 = vrot.lane.b32.xlu0 %v1126, 32
        %v1172 = vpop.permute.xlu0 %1171
        %1173 = vrot.lane.b32.xlu0 %v1127, 32
        %v1174 = vpop.permute.xlu0 %1173
        %1175 = vrot.lane.b32.xlu0 %v1128, 32
        %v1176 = vpop.permute.xlu0 %1175
        %v1193 = vmul.f32 %v871, %v1146
        %v1194 = vmul.f32 %v886, %v1148
        %v1195 = vmul.f32 %v901, %v1150
        %v1196 = vmul.f32 %v916, %v1152
        %v1197 = vmul.f32 %v931, %v1154
        %v1198 = vmul.f32 %v946, %v1156
        %v1199 = vmul.f32 %v961, %v1158
        %v1200 = vmul.f32 %v976, %v1160
        %v1201 = vmul.f32 %v991, %v1162
        %v1202 = vmul.f32 %v1006, %v1164
        %v1203 = vmul.f32 %v1021, %v1166
        %v1204 = vmul.f32 %v1036, %v1168
        %v1205 = vmul.f32 %v1051, %v1170
        %v1206 = vmul.f32 %v1066, %v1172
        %v1207 = vmul.f32 %v1081, %v1174
        %v1208 = vmul.f32 %v1096, %v1176
        %1225 = vrot.lane.b32.xlu0 %v1097, 32
        %v1226 = vpop.permute.xlu0 %1225
        %1227 = vrot.lane.b32.xlu0 %v1098, 32
        %v1228 = vpop.permute.xlu0 %1227
        %1229 = vrot.lane.b32.xlu0 %v1099, 32
        %v1230 = vpop.permute.xlu0 %1229
        %1231 = vrot.lane.b32.xlu0 %v1100, 32
        %v1232 = vpop.permute.xlu0 %1231
        %1233 = vrot.lane.b32.xlu0 %v1101, 32
        %v1234 = vpop.permute.xlu0 %1233
        %1235 = vrot.lane.b32.xlu0 %v1102, 32
        %v1236 = vpop.permute.xlu0 %1235
        %1237 = vrot.lane.b32.xlu0 %v1103, 32
        %v1238 = vpop.permute.xlu0 %1237
        %1239 = vrot.lane.b32.xlu0 %v1104, 32
        %v1240 = vpop.permute.xlu0 %1239
        %1241 = vrot.lane.b32.xlu0 %v1105, 32
        %v1242 = vpop.permute.xlu0 %1241
        %1243 = vrot.lane.b32.xlu0 %v1106, 32
        %v1244 = vpop.permute.xlu0 %1243
        %1245 = vrot.lane.b32.xlu0 %v1107, 32
        %v1246 = vpop.permute.xlu0 %1245
        %1247 = vrot.lane.b32.xlu0 %v1108, 32
        %v1248 = vpop.permute.xlu0 %1247
        %1249 = vrot.lane.b32.xlu0 %v1109, 32
        %v1250 = vpop.permute.xlu0 %1249
        %1251 = vrot.lane.b32.xlu0 %v1110, 32
        %v1252 = vpop.permute.xlu0 %1251
        %1253 = vrot.lane.b32.xlu0 %v1111, 32
        %v1254 = vpop.permute.xlu0 %1253
        %1255 = vrot.lane.b32.xlu0 %v1112, 32
        %v1256 = vpop.permute.xlu0 %1255
        %v1273 = vmul.f32 %v871, %v1226
        %v1274 = vmul.f32 %v886, %v1228
        %v1275 = vmul.f32 %v901, %v1230
        %v1276 = vmul.f32 %v916, %v1232
        %v1277 = vmul.f32 %v931, %v1234
        %v1278 = vmul.f32 %v946, %v1236
        %v1279 = vmul.f32 %v961, %v1238
        %v1280 = vmul.f32 %v976, %v1240
        %v1281 = vmul.f32 %v991, %v1242
        %v1282 = vmul.f32 %v1006, %v1244
        %v1283 = vmul.f32 %v1021, %v1246
        %v1284 = vmul.f32 %v1036, %v1248
        %v1285 = vmul.f32 %v1051, %v1250
        %v1286 = vmul.f32 %v1066, %v1252
        %v1287 = vmul.f32 %v1081, %v1254
        %v1288 = vmul.f32 %v1096, %v1256
        %1305 = vrot.lane.b32.xlu0 %v1273, 32
        %v1306 = vpop.permute.xlu0 %1305
        %1307 = vrot.lane.b32.xlu0 %v1274, 32
        %v1308 = vpop.permute.xlu0 %1307
        %1309 = vrot.lane.b32.xlu0 %v1275, 32
        %v1310 = vpop.permute.xlu0 %1309
        %1311 = vrot.lane.b32.xlu0 %v1276, 32
        %v1312 = vpop.permute.xlu0 %1311
        %1313 = vrot.lane.b32.xlu0 %v1277, 32
        %v1314 = vpop.permute.xlu0 %1313
        %1315 = vrot.lane.b32.xlu0 %v1278, 32
        %v1316 = vpop.permute.xlu0 %1315
        %1317 = vrot.lane.b32.xlu0 %v1279, 32
        %v1318 = vpop.permute.xlu0 %1317
        %1319 = vrot.lane.b32.xlu0 %v1280, 32
        %v1320 = vpop.permute.xlu0 %1319
        %1321 = vrot.lane.b32.xlu0 %v1281, 32
        %v1322 = vpop.permute.xlu0 %1321
        %1323 = vrot.lane.b32.xlu0 %v1282, 32
        %v1324 = vpop.permute.xlu0 %1323
        %1325 = vrot.lane.b32.xlu0 %v1283, 32
        %v1326 = vpop.permute.xlu0 %1325
        %1327 = vrot.lane.b32.xlu0 %v1284, 32
        %v1328 = vpop.permute.xlu0 %1327
        %1329 = vrot.lane.b32.xlu0 %v1285, 32
        %v1330 = vpop.permute.xlu0 %1329
        %1331 = vrot.lane.b32.xlu0 %v1286, 32
        %v1332 = vpop.permute.xlu0 %1331
        %1333 = vrot.lane.b32.xlu0 %v1287, 32
        %v1334 = vpop.permute.xlu0 %1333
        %1335 = vrot.lane.b32.xlu0 %v1288, 32
        %v1336 = vpop.permute.xlu0 %1335
        %v1353 = vadd.f32 %v1193, %v1306
        %v1354 = vadd.f32 %v1194, %v1308
        %v1355 = vadd.f32 %v1195, %v1310
        %v1356 = vadd.f32 %v1196, %v1312
        %v1357 = vadd.f32 %v1197, %v1314
        %v1358 = vadd.f32 %v1198, %v1316
        %v1359 = vadd.f32 %v1199, %v1318
        %v1360 = vadd.f32 %v1200, %v1320
        %v1361 = vadd.f32 %v1201, %v1322
        %v1362 = vadd.f32 %v1202, %v1324
        %v1363 = vadd.f32 %v1203, %v1326
        %v1364 = vadd.f32 %v1204, %v1328
        %v1365 = vadd.f32 %v1205, %v1330
        %v1366 = vadd.f32 %v1206, %v1332
        %v1367 = vadd.f32 %v1207, %v1334
        %v1368 = vadd.f32 %v1208, %v1336
        %v1369 = vtanh.pop %v1353
        %v1370 = vtanh.pop %v1354
        %v1371 = vtanh.pop %v1355
        %v1372 = vtanh.pop %v1356
        %v1373 = vtanh.pop %v1357
        %v1374 = vtanh.pop %v1358
        %v1375 = vtanh.pop %v1359
        %v1376 = vtanh.pop %v1360
        %v1377 = vtanh.pop %v1361
        %v1378 = vtanh.pop %v1362
        %v1379 = vtanh.pop %v1363
        %v1380 = vtanh.pop %v1364
        %v1381 = vtanh.pop %v1365
        %v1382 = vtanh.pop %v1366
        %v1383 = vtanh.pop %v1367
        %v1384 = vtanh.pop %v1368
        %1401 = vrot.lane.b32.xlu0 %v1369, 32
        %v1402 = vpop.permute.xlu0 %1401
        %1403 = vrot.lane.b32.xlu0 %v1370, 32
        %v1404 = vpop.permute.xlu0 %1403
        %1405 = vrot.lane.b32.xlu0 %v1371, 32
        %v1406 = vpop.permute.xlu0 %1405
        %1407 = vrot.lane.b32.xlu0 %v1372, 32
        %v1408 = vpop.permute.xlu0 %1407
        %1409 = vrot.lane.b32.xlu0 %v1373, 32
        %v1410 = vpop.permute.xlu0 %1409
        %1411 = vrot.lane.b32.xlu0 %v1374, 32
        %v1412 = vpop.permute.xlu0 %1411
        %1413 = vrot.lane.b32.xlu0 %v1375, 32
        %v1414 = vpop.permute.xlu0 %1413
        %1415 = vrot.lane.b32.xlu0 %v1376, 32
        %v1416 = vpop.permute.xlu0 %1415
        %1417 = vrot.lane.b32.xlu0 %v1377, 32
        %v1418 = vpop.permute.xlu0 %1417
        %1419 = vrot.lane.b32.xlu0 %v1378, 32
        %v1420 = vpop.permute.xlu0 %1419
        %1421 = vrot.lane.b32.xlu0 %v1379, 32
        %v1422 = vpop.permute.xlu0 %1421
        %1423 = vrot.lane.b32.xlu0 %v1380, 32
        %v1424 = vpop.permute.xlu0 %1423
        %1425 = vrot.lane.b32.xlu0 %v1381, 32
        %v1426 = vpop.permute.xlu0 %1425
        %1427 = vrot.lane.b32.xlu0 %v1382, 32
        %v1428 = vpop.permute.xlu0 %1427
        %1429 = vrot.lane.b32.xlu0 %v1383, 32
        %v1430 = vpop.permute.xlu0 %1429
        %1431 = vrot.lane.b32.xlu0 %v1384, 32
        %v1432 = vpop.permute.xlu0 %1431
        %v1449 = vmul.f32 %v871, %v1402
        %v1450 = vmul.f32 %v886, %v1404
        %v1451 = vmul.f32 %v901, %v1406
        %v1452 = vmul.f32 %v916, %v1408
        %v1453 = vmul.f32 %v931, %v1410
        %v1454 = vmul.f32 %v946, %v1412
        %v1455 = vmul.f32 %v961, %v1414
        %v1456 = vmul.f32 %v976, %v1416
        %v1457 = vmul.f32 %v991, %v1418
        %v1458 = vmul.f32 %v1006, %v1420
        %v1459 = vmul.f32 %v1021, %v1422
        %v1460 = vmul.f32 %v1036, %v1424
        %v1461 = vmul.f32 %v1051, %v1426
        %v1462 = vmul.f32 %v1066, %v1428
        %v1463 = vmul.f32 %v1081, %v1430
        %v1464 = vmul.f32 %v1096, %v1432
        %1481 = vrot.lane.b32.xlu0 %v1449, 64
        %v1482 = vpop.permute.xlu0 %1481
        %1483 = vrot.lane.b32.xlu0 %v1450, 64
        %v1484 = vpop.permute.xlu0 %1483
        %1485 = vrot.lane.b32.xlu0 %v1451, 64
        %v1486 = vpop.permute.xlu0 %1485
        %1487 = vrot.lane.b32.xlu0 %v1452, 64
        %v1488 = vpop.permute.xlu0 %1487
        %1489 = vrot.lane.b32.xlu0 %v1453, 64
        %v1490 = vpop.permute.xlu0 %1489
        %1491 = vrot.lane.b32.xlu0 %v1454, 64
        %v1492 = vpop.permute.xlu0 %1491
        %1493 = vrot.lane.b32.xlu0 %v1455, 64
        %v1494 = vpop.permute.xlu0 %1493
        %1495 = vrot.lane.b32.xlu0 %v1456, 64
        %v1496 = vpop.permute.xlu0 %1495
        %1497 = vrot.lane.b32.xlu0 %v1457, 64
        %v1498 = vpop.permute.xlu0 %1497
        %1499 = vrot.lane.b32.xlu0 %v1458, 64
        %v1500 = vpop.permute.xlu0 %1499
        %1501 = vrot.lane.b32.xlu0 %v1459, 64
        %v1502 = vpop.permute.xlu0 %1501
        %1503 = vrot.lane.b32.xlu0 %v1460, 64
        %v1504 = vpop.permute.xlu0 %1503
        %1505 = vrot.lane.b32.xlu0 %v1461, 64
        %v1506 = vpop.permute.xlu0 %1505
        %1507 = vrot.lane.b32.xlu0 %v1462, 64
        %v1508 = vpop.permute.xlu0 %1507
        %1509 = vrot.lane.b32.xlu0 %v1463, 64
        %v1510 = vpop.permute.xlu0 %1509
        %1511 = vrot.lane.b32.xlu0 %v1464, 64
        %v1512 = vpop.permute.xlu0 %1511
        %vm1529 = vcmask 261120
        %v1530 = vsel %vm1529, %v1482, %v1353
        %v1531 = vsel %vm1529, %v1484, %v1354
        %v1532 = vsel %vm1529, %v1486, %v1355
        %v1533 = vsel %vm1529, %v1488, %v1356
        %v1534 = vsel %vm1529, %v1490, %v1357
        %v1535 = vsel %vm1529, %v1492, %v1358
        %v1536 = vsel %vm1529, %v1494, %v1359
        %v1537 = vsel %vm1529, %v1496, %v1360
        %v1538 = vsel %vm1529, %v1498, %v1361
        %v1539 = vsel %vm1529, %v1500, %v1362
        %v1540 = vsel %vm1529, %v1502, %v1363
        %v1541 = vsel %vm1529, %v1504, %v1364
        %v1542 = vsel %vm1529, %v1506, %v1365
        %v1543 = vsel %vm1529, %v1508, %v1366
        %v1544 = vsel %vm1529, %v1510, %v1367
        %v1545 = vsel %vm1529, %v1512, %v1368
        %vm1546 = vcmask 523264
        %v1547 = vsel %vm1546, %v1530, 0.0
        %v1548 = vsel %vm1546, %v1531, 0.0
        %v1549 = vsel %vm1546, %v1532, 0.0
        %v1550 = vsel %vm1546, %v1533, 0.0
        %v1551 = vsel %vm1546, %v1534, 0.0
        %v1552 = vsel %vm1546, %v1535, 0.0
        %v1553 = vsel %vm1546, %v1536, 0.0
        %v1554 = vsel %vm1546, %v1537, 0.0
        %v1555 = vsel %vm1546, %v1538, 0.0
        %v1556 = vsel %vm1546, %v1539, 0.0
        %v1557 = vsel %vm1546, %v1540, 0.0
        %v1558 = vsel %vm1546, %v1541, 0.0
        %v1559 = vsel %vm1546, %v1542, 0.0
        %v1560 = vsel %vm1546, %v1543, 0.0
        %v1561 = vsel %vm1546, %v1544, 0.0
        %v1562 = vsel %vm1546, %v1545, 0.0
        %1563 = vst [vmem:[%s240] sm:$0xff] %v1547
        %1564 = vst [vmem:[%s240 + $0x8] sm:$0xff] %v1548
        %1565 = vst [vmem:[%s240 + $0x10] sm:$0xff] %v1549
        %1566 = vst [vmem:[%s240 + $0x18] sm:$0xff] %v1550
        %1567 = vst [vmem:[%s240 + $0x20] sm:$0xff] %v1551
        %1568 = vst [vmem:[%s240 + $0x28] sm:$0xff] %v1552
        %1569 = vst [vmem:[%s240 + $0x30] sm:$0xff] %v1553
        %1570 = vst [vmem:[%s240 + $0x38] sm:$0xff] %v1554
        %1571 = vst [vmem:[%s240 + $0x40] sm:$0xff] %v1555
        %1572 = vst [vmem:[%s240 + $0x48] sm:$0xff] %v1556
        %1573 = vst [vmem:[%s240 + $0x50] sm:$0xff] %v1557
        %1574 = vst [vmem:[%s240 + $0x58] sm:$0xff] %v1558
        %1575 = vst [vmem:[%s240 + $0x60] sm:$0xff] %v1559
        %1576 = vst [vmem:[%s240 + $0x68] sm:$0xff] %v1560
        %1577 = vst [vmem:[%s240 + $0x70] sm:$0xff] %v1561
        %1578 = vst [vmem:[%s240 + $0x78] sm:$0xff] %v1562
        %s1579 = sand.u32 %s138, 1
        %s1580 = scalar_lea.sflag [#allocation3], %s1579
        %s1581 = sand.u32 %s138, 1
        %s1582 = smul.addr %s1581, 128
        %s1583 = scalar_lea.vmem [#allocation2], %s1582
        // Predicated region
        $region37: #{tpu_custom_call.1} parent=35 // pred_check
          %p1584 = pneg %p148
        $region38: #{tpu_custom_call.1} parent=35 // pred_check_branch
          %1586 = sbr.rel (%p1584) target = $region40
        $region39: #{tpu_custom_call.1} parent=35 // pred_region
          %s1587 = smul.u32 16, %s23
          %1589 = vsyncadd %s1580, 0
          %s1590 = smul.addr %s22, 32
          %s1591 = sadd.s32 %s1587, %s1590
          %s1592 = smul.addr %s1591, 8
          %s1593 = scalar_lea.hbm %s4, %s1592
          %s1594 = sshll.u32 %s1583, 4
          %s1595 = int_to_ptr.vmem [resolvable:$true] %s1594
          %s1596 = sshll.u32 %s1593, 4
          %s1597 = int_to_ptr.hbm [resolvable:$true] %s1596
          %1602 = dma.vmem_to_hbm [thread:$0]  %s1595, 2048, %s1597, %s1580, 128, 128, 8
        $region40: #{tpu_custom_call.1} parent=35 // pred_fallthru
          _
      $region36: #{tpu_custom_call.1} parent=5 // pred_fallthru
        _
      %p1603 = scmp.le.s32.totalorder 2, %s13
      // Predicated region
      $region41: #{tpu_custom_call.1} parent=5 // pred_check
        %p1604 = pneg %p1603
      $region42: #{tpu_custom_call.1} parent=5 // pred_check_branch
        %1606 = sbr.rel (%p1604) target = $region44
      $region43: #{tpu_custom_call.1} parent=5 // pred_region
        %s1607 = ssub.s32 %s13, 2
        // Predicated region
        $region45: #{tpu_custom_call.1} parent=43 // pred_check
          %p1608 = pneg %p154
        $region46: #{tpu_custom_call.1} parent=43 // pred_check_branch
          %1610 = sbr.rel (%p1608) target = $region48
        $region47: #{tpu_custom_call.1} parent=43 // pred_region
          %s1611 = sand.u32 %s139, 1
          %s1612 = scalar_lea.sflag [#allocation3], %s1611
          %s1613 = sand.u32 %s139, 1
          %s1614 = smul.addr %s1613, 128
          %s1615 = scalar_lea.vmem [#allocation2], %s1614
          %1617 = dma.done %s1612, 2048
        $region48: #{tpu_custom_call.1} parent=43 // pred_fallthru
          _
      $region44: #{tpu_custom_call.1} parent=5 // pred_fallthru
        _
    $region6: #{tpu_custom_call.1} parent=1 // loop_footer
      %s17 = sadd.s32 1, %s13
    $region7: #{tpu_custom_call.1} parent=1 // loop_footer_branch
      %12 = sbr.rel target = $region3
    $region8: #{tpu_custom_call.1} parent=1 // loop_exit
      _
    %1618 = vsyncpa [#allocation3], 1
    %s1619 = scalar_lea.sflag [#allocation3], 1
    %1620 = vsyncpa %s1619, 1

</llo_original>
